<compile_context>
chip_gen: v7x
topology: tpu7x:2x2x1
jax: 0.10.0
libtpu: 0.0.40
codegen_flags: <defaults>
</compile_context>

<pallas_src>
import functools

import jax
import jax.numpy as jnp
from jax.experimental import pallas as pl
from jax.experimental.pallas import tpu as pltpu

LANE = 128


def ff_classifier_kernel(x_ref, w1_ref, b1_ref, w2_ref, b2_ref, w3_ref, b3_ref, o_ref,
                         *, num_classes):
    """One batch tile: 3 MXU matmuls (bf16 in, f32 accum), f32 bias/ReLU/softmax."""
    # In-kernel cast: x travels HBM->VMEM as f32, becomes bf16 only for the MXU.
    x = x_ref[...].astype(jnp.bfloat16)                                   # (TB, D)

    # Layer 1: Linear + ReLU
    h1 = jnp.dot(x, w1_ref[...], preferred_element_type=jnp.float32) + b1_ref[...]
    h1 = jnp.maximum(h1, 0.0).astype(jnp.bfloat16)

    # Layer 2: Linear + ReLU
    h2 = jnp.dot(h1, w2_ref[...], preferred_element_type=jnp.float32) + b2_ref[...]
    h2 = jnp.maximum(h2, 0.0).astype(jnp.bfloat16)

    # Layer 3: Linear + Softmax over the real classes only.
    logits = jnp.dot(h2, w3_ref[...], preferred_element_type=jnp.float32) + b3_ref[...]

    # Exact masking of the lane-padded class columns (values in the padded weight/bias
    # columns are irrelevant): padded columns contribute exactly 0 to the softmax.
    col = jax.lax.broadcasted_iota(jnp.int32, logits.shape, 1)
    valid = col < num_classes
    m = jnp.max(jnp.where(valid, logits, jnp.float32(-1e30)), axis=-1, keepdims=True)
    e = jnp.where(valid, jnp.exp(logits - m), 0.0)
    denom = jnp.sum(e, axis=-1, keepdims=True)
    probs = e / denom                      # exact normalization: rows sum to 1 in f32
    o_ref[...] = probs.astype(o_ref.dtype)


def _choose_batch_tile(B):
    """Batch tile (rows) per grid step."""
    if B <= 16:
        # Tiny batch: single block, rounded to a bf16-native 16-row multiple.
        return ((B + 15) // 16) * 16
    # Large batches: big tiles amortize per-step overhead; cap at 512 so f32 x tiles
    # (2 MiB x 2 buffers) + weights + intermediates stay inside v5e's 16 MiB scoped VMEM.
    desired = 512
    # Keep at least 2 blocks on the batch axis so v7x's two TensorCores both get work.
    half = ((B + 1) // 2 + 15) // 16 * 16
    return max(16, min(desired, half))


def feed_forward_classifier(x, kparams, num_classes):
    """x: (B, ...) NCHW-like, any float dtype. kparams: prepared (bf16, class-padded)
    params. Returns softmax probabilities (B, num_classes) in f32."""
    w1, b1, w2, b2, w3, b3 = kparams
    B = x.shape[0]
    D, H1 = w1.shape
    H2 = w2.shape[1]
    C_pad = w3.shape[1]

    # 'b ... -> b (...)' — keep f32; the bf16 cast happens inside the kernel.
    x_flat = x.reshape(B, -1).astype(jnp.float32)
    assert x_flat.shape[1] == D

    TB = _choose_batch_tile(B)
    B_pad = pl.cdiv(B, TB) * TB
    if B_pad != B:
        # Remainder-only path; no copy when B is already a multiple of the tile.
        x_flat = jnp.pad(x_flat, ((0, B_pad - B), (0, 0)))

    grid = (B_pad // TB,)

    flops = 2 * B_pad * (D * H1 + H1 * H2 + H2 * C_pad)
    bytes_accessed = (
        B_pad * D * 4                                      # f32 activations in
        + (w1.size + w2.size + w3.size) * 2                # bf16 weights
        + (b1.size + b2.size + b3.size) * 4                # f32 biases
        + B_pad * C_pad * 2                                 # bf16 probs out
    )
    cost = pl.CostEstimate(
        flops=int(flops),
        transcendentals=int(B_pad * C_pad),                # exp
        bytes_accessed=int(bytes_accessed),
    )

    def resident(shape):
        # Constant block index -> loaded once, stays VMEM-resident across grid steps.
        return pl.BlockSpec(shape, lambda i: (0, 0))

    out = pl.pallas_call(
        functools.partial(ff_classifier_kernel, num_classes=num_classes),
        out_shape=jax.ShapeDtypeStruct((B_pad, C_pad), jnp.bfloat16),
        grid=grid,
        in_specs=[
            pl.BlockSpec((TB, D), lambda i: (i, 0)),       # x: tiled over batch
            resident(w1.shape), resident(b1.shape),
            resident(w2.shape), resident(b2.shape),
            resident(w3.shape), resident(b3.shape),
        ],
        out_specs=pl.BlockSpec((TB, C_pad), lambda i: (i, 0)),
        compiler_params=pltpu.CompilerParams(dimension_semantics=("parallel",)),
        cost_estimate=cost,
    )(x_flat, w1, b1, w2, b2, w3, b3)

    # Upcast + slice in the wrapper (tiny); kernel writeback stays bf16 / lane-dense.
    return out[:B, :num_classes].astype(jnp.float32)


def init_params(key, input_dim, hidden_dims, num_classes):
    """Mimics nn.Linear's uniform(-1/sqrt(fan_in), 1/sqrt(fan_in)) init (f32).

    Weights stored as (in_features, out_features); biases as (1, out_features)."""
    net_dims = [input_dim] + list(hidden_dims) + [num_classes]
    params = []
    for i in range(len(net_dims) - 1):
        fan_in, fan_out = net_dims[i], net_dims[i + 1]
        key, kw, kb = jax.random.split(key, 3)
        bound = 1.0 / (fan_in ** 0.5)
        w = jax.random.uniform(kw, (fan_in, fan_out), jnp.float32, -bound, bound)
        b = jax.random.uniform(kb, (1, fan_out), jnp.float32, -bound, bound)
        params += [w, b]
    return tuple(params)


def prepare_kernel_params(params):
    """Cast weights to bf16, keep biases f32, pad the class dim to a multiple of 128
    lanes (padded columns are masked exactly inside the kernel, so pad values are 0)."""
    w1, b1, w2, b2, w3, b3 = params
    C = w3.shape[1]
    C_pad = ((C + LANE - 1) // LANE) * LANE
    w3p = jnp.pad(w3, ((0, 0), (0, C_pad - C)))
    b3p = jnp.pad(b3, ((0, 0), (0, C_pad - C)))
    return (
        w1.astype(jnp.bfloat16), b1.astype(jnp.float32),
        w2.astype(jnp.bfloat16), b2.astype(jnp.float32),
        w3p.astype(jnp.bfloat16), b3p.astype(jnp.float32),
    )


def reference_forward_matched(x, kparams, num_classes):
    """Pure-JAX reference using the same bf16 weights/activations as the kernel."""
    w1, b1, w2, b2, w3, b3 = kparams
    B = x.shape[0]
    h = x.reshape(B, -1).astype(jnp.bfloat16)
    h = jnp.maximum(jnp.dot(h, w1, preferred_element_type=jnp.float32) + b1, 0.0)
    h = h.astype(jnp.bfloat16)
    h = jnp.maximum(jnp.dot(h, w2, preferred_element_type=jnp.float32) + b2, 0.0)
    h = h.astype(jnp.bfloat16)
    logits = jnp.dot(h, w3, preferred_element_type=jnp.float32) + b3
    return jax.nn.softmax(logits[:, :num_classes], axis=-1)


def reference_forward_f32(x, params):
    """Full-precision reference of the original PyTorch semantics."""
    B = x.shape[0]
    h = x.reshape(B, -1).astype(jnp.float32)
    w1, b1, w2, b2, w3, b3 = params
    h = jnp.maximum(h @ w1 + b1, 0.0)
    h = jnp.maximum(h @ w2 + b2, 0.0)
    return jax.nn.softmax(h @ w3 + b3, axis=1)


if __name__ == "__main__":
    # Small shapes: batch=2, NCHW input [2, 4, 16, 16] -> input_dim = 4*16*16 = 1024
    B, C, H, W = 2, 4, 16, 16
    input_dim = C * H * W
    hidden_dims = [256, 128]
    num_classes = 10

    key = jax.random.PRNGKey(0)
    key, kx = jax.random.split(key)
    x = jax.random.normal(kx, (B, C, H, W), dtype=jnp.float32)

    params = init_params(key, input_dim, hidden_dims, num_classes)
    kparams = prepare_kernel_params(params)

    forward = jax.jit(functools.partial(
        feed_forward_classifier, kparams=kparams, num_classes=num_classes))
    out = jax.block_until_ready(forward(x))

    assert out.shape == (B, num_classes)
    assert bool(jnp.all(jnp.isfinite(out)))
    # Exact in-kernel normalization; only bf16 output rounding perturbs the row sums.
    assert jnp.allclose(jnp.sum(out, axis=1), 1.0, atol=8e-3)
    # Check vs a reference with matched bf16 precision.
    ref_bf16 = reference_forward_matched(x, kparams, num_classes)
    assert jnp.allclose(out, ref_bf16, atol=1e-2)
    # Loose check vs the full-f32 PyTorch-semantics reference.
    ref_f32 = reference_forward_f32(x, params)
    assert jnp.allclose(out, ref_f32, atol=5e-2)

    print("KERNEL_OK")
</pallas_src>

<mosaic_0001>
module attributes {stable_mosaic.version = 11 : i64} {
  func.func @ff_classifier_kernel(%arg0: i32, %arg1: memref<16x1024xf32, #tpu.memory_space<vmem>>, %arg2: memref<1024x256xbf16, #tpu.memory_space<vmem>>, %arg3: memref<1x256xf32, #tpu.memory_space<vmem>>, %arg4: memref<256x128xbf16, #tpu.memory_space<vmem>>, %arg5: memref<1x128xf32, #tpu.memory_space<vmem>>, %arg6: memref<128x128xbf16, #tpu.memory_space<vmem>>, %arg7: memref<1x128xf32, #tpu.memory_space<vmem>>, %arg8: memref<16x128xbf16, #tpu.memory_space<vmem>>) attributes {dimension_semantics = [#tpu.dimension_semantics<parallel>], iteration_bounds = array<i64: 1>, scalar_prefetch = 0 : i64, scratch_operands = 0 : i64, tpu.core_type = #tpu.core_type<tc>, window_params = [{transform_indices = @transform_0, window_bounds = array<i64: 16, 1024>}, {pipeline_mode = #tpu.pipeline_mode<synchronous>, transform_indices = @transform_1, window_bounds = array<i64: 1024, 256>}, {pipeline_mode = #tpu.pipeline_mode<synchronous>, transform_indices = @transform_2, window_bounds = array<i64: 1, 256>}, {pipeline_mode = #tpu.pipeline_mode<synchronous>, transform_indices = @transform_3, window_bounds = array<i64: 256, 128>}, {pipeline_mode = #tpu.pipeline_mode<synchronous>, transform_indices = @transform_4, window_bounds = array<i64: 1, 128>}, {pipeline_mode = #tpu.pipeline_mode<synchronous>, transform_indices = @transform_5, window_bounds = array<i64: 128, 128>}, {pipeline_mode = #tpu.pipeline_mode<synchronous>, transform_indices = @transform_6, window_bounds = array<i64: 1, 128>}, {transform_indices = @transform_7, window_bounds = array<i64: 16, 128>}]} {
    %c0 = arith.constant 0 : index
    %c0_0 = arith.constant 0 : index
    %0 = vector.load %arg1[%c0, %c0_0] : memref<16x1024xf32, #tpu.memory_space<vmem>>, vector<16x1024xf32>
    %1 = arith.truncf %0 : vector<16x1024xf32> to vector<16x1024xbf16>
    %c0_1 = arith.constant 0 : index
    %c0_2 = arith.constant 0 : index
    %2 = vector.load %arg2[%c0_1, %c0_2] : memref<1024x256xbf16, #tpu.memory_space<vmem>>, vector<1024x256xbf16>
    %cst = arith.constant dense<0.000000e+00> : vector<16x256xf32>
    %3 = tpu.matmul %1, %2, %cst {dimension_numbers = #tpu.dot_dimension_numbers<[1], [0], [0], [1], [0, 0, 1, 1], [], []>} : vector<16x1024xbf16>, vector<1024x256xbf16>, vector<16x256xf32> -> vector<16x256xf32>
    %c0_3 = arith.constant 0 : index
    %c0_4 = arith.constant 0 : index
    %4 = vector.load %arg3[%c0_3, %c0_4] : memref<1x256xf32, #tpu.memory_space<vmem>>, vector<1x256xf32>
    %5 = vector.broadcast %4 : vector<1x256xf32> to vector<16x256xf32>
    %6 = arith.addf %3, %5 : vector<16x256xf32>
    %cst_5 = arith.constant 0.000000e+00 : f32
    %7 = vector.broadcast %cst_5 : f32 to vector<16x256xf32>
    %8 = arith.maximumf %6, %7 : vector<16x256xf32>
    %9 = arith.truncf %8 : vector<16x256xf32> to vector<16x256xbf16>
    %c0_6 = arith.constant 0 : index
    %c0_7 = arith.constant 0 : index
    %10 = vector.load %arg4[%c0_6, %c0_7] : memref<256x128xbf16, #tpu.memory_space<vmem>>, vector<256x128xbf16>
    %cst_8 = arith.constant dense<0.000000e+00> : vector<16x128xf32>
    %11 = tpu.matmul %9, %10, %cst_8 {dimension_numbers = #tpu.dot_dimension_numbers<[1], [0], [0], [1], [0, 0, 1, 1], [], []>} : vector<16x256xbf16>, vector<256x128xbf16>, vector<16x128xf32> -> vector<16x128xf32>
    %c0_9 = arith.constant 0 : index
    %c0_10 = arith.constant 0 : index
    %12 = vector.load %arg5[%c0_9, %c0_10] : memref<1x128xf32, #tpu.memory_space<vmem>>, vector<1x128xf32>
    %13 = vector.broadcast %12 : vector<1x128xf32> to vector<16x128xf32>
    %14 = arith.addf %11, %13 : vector<16x128xf32>
    %cst_11 = arith.constant 0.000000e+00 : f32
    %15 = vector.broadcast %cst_11 : f32 to vector<16x128xf32>
    %16 = arith.maximumf %14, %15 : vector<16x128xf32>
    %17 = arith.truncf %16 : vector<16x128xf32> to vector<16x128xbf16>
    %c0_12 = arith.constant 0 : index
    %c0_13 = arith.constant 0 : index
    %18 = vector.load %arg6[%c0_12, %c0_13] : memref<128x128xbf16, #tpu.memory_space<vmem>>, vector<128x128xbf16>
    %cst_14 = arith.constant dense<0.000000e+00> : vector<16x128xf32>
    %19 = tpu.matmul %17, %18, %cst_14 {dimension_numbers = #tpu.dot_dimension_numbers<[1], [0], [0], [1], [0, 0, 1, 1], [], []>} : vector<16x128xbf16>, vector<128x128xbf16>, vector<16x128xf32> -> vector<16x128xf32>
    %c0_15 = arith.constant 0 : index
    %c0_16 = arith.constant 0 : index
    %20 = vector.load %arg7[%c0_15, %c0_16] : memref<1x128xf32, #tpu.memory_space<vmem>>, vector<1x128xf32>
    %21 = vector.broadcast %20 : vector<1x128xf32> to vector<16x128xf32>
    %22 = arith.addf %19, %21 : vector<16x128xf32>
    %23 = tpu.iota {dimensions = array<i32: 1>} : vector<16x128xi32>
    %c10_i32 = arith.constant 10 : i32
    %24 = vector.broadcast %c10_i32 : i32 to vector<16x128xi32>
    %25 = arith.cmpi slt, %23, %24 : vector<16x128xi32>
    %cst_17 = arith.constant -1.000000e+30 : f32
    %26 = vector.broadcast %cst_17 : f32 to vector<16x128xf32>
    %27 = arith.select %25, %22, %26 : vector<16x128xi1>, vector<16x128xf32>
    %cst_18 = arith.constant dense<0xFF800000> : vector<16xf32>
    %28 = vector.multi_reduction <maximumf>, %27, %cst_18 [1] : vector<16x128xf32> to vector<16xf32>
    %29 = vector.shape_cast %28 : vector<16xf32> to vector<16x1xf32>
    %30 = vector.broadcast %29 : vector<16x1xf32> to vector<16x128xf32>
    %31 = arith.subf %22, %30 : vector<16x128xf32>
    %32 = math.exp %31 : vector<16x128xf32>
    %cst_19 = arith.constant 0.000000e+00 : f32
    %33 = vector.broadcast %cst_19 : f32 to vector<16x128xf32>
    %34 = arith.select %25, %32, %33 : vector<16x128xi1>, vector<16x128xf32>
    %cst_20 = arith.constant dense<0.000000e+00> : vector<16xf32>
    %35 = vector.multi_reduction <add>, %34, %cst_20 [1] : vector<16x128xf32> to vector<16xf32>
    %36 = vector.shape_cast %35 : vector<16xf32> to vector<16x1xf32>
    %37 = vector.broadcast %36 : vector<16x1xf32> to vector<16x128xf32>
    %38 = arith.divf %34, %37 : vector<16x128xf32>
    %39 = arith.truncf %38 : vector<16x128xf32> to vector<16x128xbf16>
    %c0_21 = arith.constant 0 : index
    %c0_22 = arith.constant 0 : index
    %40 = vector.load %arg8[%c0_21, %c0_22] : memref<16x128xbf16, #tpu.memory_space<vmem>>, vector<16x128xbf16>
    tpu.vector_store %arg8[%c0_21, %c0_22], %39 {strides = array<i32>} : memref<16x128xbf16, #tpu.memory_space<vmem>>, vector<16x128xbf16>,
    return
  }
  func.func @transform_0(%arg0: i32) -> (i32, i32) {
    %c0_i32 = arith.constant 0 : i32
    %c0_i32_0 = arith.constant 0 : i32
    return %arg0, %c0_i32 : i32, i32
  }
  func.func @transform_1(%arg0: i32) -> (i32, i32) {
    %c0_i32 = arith.constant 0 : i32
    %c0_i32_0 = arith.constant 0 : i32
    %c0_i32_1 = arith.constant 0 : i32
    return %c0_i32, %c0_i32_0 : i32, i32
  }
  func.func @transform_2(%arg0: i32) -> (i32, i32) {
    %c0_i32 = arith.constant 0 : i32
    %c0_i32_0 = arith.constant 0 : i32
    %c0_i32_1 = arith.constant 0 : i32
    return %c0_i32, %c0_i32_0 : i32, i32
  }
  func.func @transform_3(%arg0: i32) -> (i32, i32) {
    %c0_i32 = arith.constant 0 : i32
    %c0_i32_0 = arith.constant 0 : i32
    %c0_i32_1 = arith.constant 0 : i32
    return %c0_i32, %c0_i32_0 : i32, i32
  }
  func.func @transform_4(%arg0: i32) -> (i32, i32) {
    %c0_i32 = arith.constant 0 : i32
    %c0_i32_0 = arith.constant 0 : i32
    %c0_i32_1 = arith.constant 0 : i32
    return %c0_i32, %c0_i32_0 : i32, i32
  }
  func.func @transform_5(%arg0: i32) -> (i32, i32) {
    %c0_i32 = arith.constant 0 : i32
    %c0_i32_0 = arith.constant 0 : i32
    %c0_i32_1 = arith.constant 0 : i32
    return %c0_i32, %c0_i32_0 : i32, i32
  }
  func.func @transform_6(%arg0: i32) -> (i32, i32) {
    %c0_i32 = arith.constant 0 : i32
    %c0_i32_0 = arith.constant 0 : i32
    %c0_i32_1 = arith.constant 0 : i32
    return %c0_i32, %c0_i32_0 : i32, i32
  }
  func.func @transform_7(%arg0: i32) -> (i32, i32) {
    %c0_i32 = arith.constant 0 : i32
    %c0_i32_0 = arith.constant 0 : i32
    return %arg0, %c0_i32 : i32, i32
  }
}

</mosaic_0001>

<llo_original>
// kernel: feed_forward_classifier.1
$region0: #{feed_forward_classifier.1}
  #allocation0 [shape = 'u32[]', space=smem, size = 0x4, offset = 0x4, fixed_abs, tag = 'smem constant byte address 0x4 - core index']
  #allocation1 [shape = 'u32[144,128]{1,0:T(1,128)}', space=vmem, size = 0x12000, scoped, tag = 'internal scratch']
  %s0 = inlined_call_operand.vmem [shape: f32[16,1024], index: 0, kind: input, shape index: {}]
  %s1 = inlined_call_operand.vmem [shape: bf16[1024,256], index: 1, kind: input, shape index: {}]
  %s2 = inlined_call_operand.vmem [shape: f32[1,256], index: 2, kind: input, shape index: {}]
  %s3 = inlined_call_operand.vmem [shape: bf16[256,128], index: 3, kind: input, shape index: {}]
  %s4 = inlined_call_operand.vmem [shape: f32[1,128], index: 4, kind: input, shape index: {}]
  %s5 = inlined_call_operand.vmem [shape: bf16[128,128], index: 5, kind: input, shape index: {}]
  %s6 = inlined_call_operand.vmem [shape: f32[1,128], index: 6, kind: input, shape index: {}]
  %s7 = inlined_call_operand.vmem [shape: bf16[16,128], index: 7, kind: output, shape index: {}]
  %s8 = sld [smem:[#allocation0]]
  $region38: #{feed_forward_classifier.1} parent=0
    _
  %s10 = ssub.s32 1, %s8
  %s11 = scalar_select 0, %s10, %s8
  // Predicated region
  $region2: #{feed_forward_classifier.1} parent=0 // pred_check
    _
  $region3: #{feed_forward_classifier.1} parent=0 // pred_check_branch
    %13 = sbr.rel (0) target = $region5
  $region4: #{feed_forward_classifier.1} parent=0 // pred_region
    _
  $region5: #{feed_forward_classifier.1} parent=0 // pred_fallthru
    _
  // Predicated region
  $region6: #{feed_forward_classifier.1} parent=0 // pred_check
    _
  $region7: #{feed_forward_classifier.1} parent=0 // pred_check_branch
    %15 = sbr.rel (0) target = $region9
  $region8: #{feed_forward_classifier.1} parent=0 // pred_region
    _
  $region9: #{feed_forward_classifier.1} parent=0 // pred_fallthru
    _
  // Predicated region
  $region10: #{feed_forward_classifier.1} parent=0 // pred_check
    _
  $region11: #{feed_forward_classifier.1} parent=0 // pred_check_branch
    %17 = sbr.rel (0) target = $region13
  $region12: #{feed_forward_classifier.1} parent=0 // pred_region
    _
  $region13: #{feed_forward_classifier.1} parent=0 // pred_fallthru
    _
  // Predicated region
  $region14: #{feed_forward_classifier.1} parent=0 // pred_check
    _
  $region15: #{feed_forward_classifier.1} parent=0 // pred_check_branch
    %19 = sbr.rel (0) target = $region17
  $region16: #{feed_forward_classifier.1} parent=0 // pred_region
    _
  $region17: #{feed_forward_classifier.1} parent=0 // pred_fallthru
    _
  // Predicated region
  $region18: #{feed_forward_classifier.1} parent=0 // pred_check
    _
  $region19: #{feed_forward_classifier.1} parent=0 // pred_check_branch
    %21 = sbr.rel (0) target = $region21
  $region20: #{feed_forward_classifier.1} parent=0 // pred_region
    _
  $region21: #{feed_forward_classifier.1} parent=0 // pred_fallthru
    _
  // Predicated region
  $region22: #{feed_forward_classifier.1} parent=0 // pred_check
    _
  $region23: #{feed_forward_classifier.1} parent=0 // pred_check_branch
    %23 = sbr.rel (0) target = $region25
  $region24: #{feed_forward_classifier.1} parent=0 // pred_region
    _
  $region25: #{feed_forward_classifier.1} parent=0 // pred_fallthru
    _
  // Predicated region
  $region26: #{feed_forward_classifier.1} parent=0 // pred_check
    _
  $region27: #{feed_forward_classifier.1} parent=0 // pred_check_branch
    %25 = sbr.rel (0) target = $region29
  $region28: #{feed_forward_classifier.1} parent=0 // pred_region
    _
  $region29: #{feed_forward_classifier.1} parent=0 // pred_fallthru
    _
  %v27 = vld [vmem:[%s0] sm:$0xff]
  %v28 = vld [vmem:[%s0 + $0x8] sm:$0xff]
  %v29 = vld [vmem:[%s0 + $0x10] sm:$0xff]
  %v30 = vld [vmem:[%s0 + $0x18] sm:$0xff]
  %v31 = vld [vmem:[%s0 + $0x20] sm:$0xff]
  %v32 = vld [vmem:[%s0 + $0x28] sm:$0xff]
  %v33 = vld [vmem:[%s0 + $0x30] sm:$0xff]
  %v34 = vld [vmem:[%s0 + $0x38] sm:$0xff]
  %v35 = vld [vmem:[%s0 + $0x40] sm:$0xff]
  %v36 = vld [vmem:[%s0 + $0x48] sm:$0xff]
  %v37 = vld [vmem:[%s0 + $0x50] sm:$0xff]
  %v38 = vld [vmem:[%s0 + $0x58] sm:$0xff]
  %v39 = vld [vmem:[%s0 + $0x60] sm:$0xff]
  %v40 = vld [vmem:[%s0 + $0x68] sm:$0xff]
  %v41 = vld [vmem:[%s0 + $0x70] sm:$0xff]
  %v42 = vld [vmem:[%s0 + $0x78] sm:$0xff]
  %v43 = vpack.c.bf16 %v35, %v27
  %v44 = vpack.c.bf16 %v36, %v28
  %v45 = vpack.c.bf16 %v37, %v29
  %v46 = vpack.c.bf16 %v38, %v30
  %v47 = vpack.c.bf16 %v39, %v31
  %v48 = vpack.c.bf16 %v40, %v32
  %v49 = vpack.c.bf16 %v41, %v33
  %v50 = vpack.c.bf16 %v42, %v34
  %v51 = vld [vmem:[%s1] sm:$0xff]
  %v52 = vld [vmem:[%s1 + $0x8] sm:$0xff]
  %v53 = vld [vmem:[%s1 + $0x10] sm:$0xff]
  %v54 = vld [vmem:[%s1 + $0x18] sm:$0xff]
  %v55 = vld [vmem:[%s1 + $0x20] sm:$0xff]
  %v56 = vld [vmem:[%s1 + $0x28] sm:$0xff]
  %v57 = vld [vmem:[%s1 + $0x30] sm:$0xff]
  %v58 = vld [vmem:[%s1 + $0x38] sm:$0xff]
  %v59 = vld [vmem:[%s1 + $0x40] sm:$0xff]
  %v60 = vld [vmem:[%s1 + $0x48] sm:$0xff]
  %v61 = vld [vmem:[%s1 + $0x50] sm:$0xff]
  %v62 = vld [vmem:[%s1 + $0x58] sm:$0xff]
  %v63 = vld [vmem:[%s1 + $0x60] sm:$0xff]
  %v64 = vld [vmem:[%s1 + $0x68] sm:$0xff]
  %v65 = vld [vmem:[%s1 + $0x70] sm:$0xff]
  %v66 = vld [vmem:[%s1 + $0x78] sm:$0xff]
  %v67 = vld [vmem:[%s1 + $0x80] sm:$0xff]
  %v68 = vld [vmem:[%s1 + $0x88] sm:$0xff]
  %v69 = vld [vmem:[%s1 + $0x90] sm:$0xff]
  %v70 = vld [vmem:[%s1 + $0x98] sm:$0xff]
  %v71 = vld [vmem:[%s1 + $0xa0] sm:$0xff]
  %v72 = vld [vmem:[%s1 + $0xa8] sm:$0xff]
  %v73 = vld [vmem:[%s1 + $0xb0] sm:$0xff]
  %v74 = vld [vmem:[%s1 + $0xb8] sm:$0xff]
  %v75 = vld [vmem:[%s1 + $0xc0] sm:$0xff]
  %v76 = vld [vmem:[%s1 + $0xc8] sm:$0xff]
  %v77 = vld [vmem:[%s1 + $0xd0] sm:$0xff]
  %v78 = vld [vmem:[%s1 + $0xd8] sm:$0xff]
  %v79 = vld [vmem:[%s1 + $0xe0] sm:$0xff]
  %v80 = vld [vmem:[%s1 + $0xe8] sm:$0xff]
  %v81 = vld [vmem:[%s1 + $0xf0] sm:$0xff]
  %v82 = vld [vmem:[%s1 + $0xf8] sm:$0xff]
  %v83 = vld [vmem:[%s1 + $0x100] sm:$0xff]
  %v84 = vld [vmem:[%s1 + $0x108] sm:$0xff]
  %v85 = vld [vmem:[%s1 + $0x110] sm:$0xff]
  %v86 = vld [vmem:[%s1 + $0x118] sm:$0xff]
  %v87 = vld [vmem:[%s1 + $0x120] sm:$0xff]
  %v88 = vld [vmem:[%s1 + $0x128] sm:$0xff]
  %v89 = vld [vmem:[%s1 + $0x130] sm:$0xff]
  %v90 = vld [vmem:[%s1 + $0x138] sm:$0xff]
  %v91 = vld [vmem:[%s1 + $0x140] sm:$0xff]
  %v92 = vld [vmem:[%s1 + $0x148] sm:$0xff]
  %v93 = vld [vmem:[%s1 + $0x150] sm:$0xff]
  %v94 = vld [vmem:[%s1 + $0x158] sm:$0xff]
  %v95 = vld [vmem:[%s1 + $0x160] sm:$0xff]
  %v96 = vld [vmem:[%s1 + $0x168] sm:$0xff]
  %v97 = vld [vmem:[%s1 + $0x170] sm:$0xff]
  %v98 = vld [vmem:[%s1 + $0x178] sm:$0xff]
  %v99 = vld [vmem:[%s1 + $0x180] sm:$0xff]
  %v100 = vld [vmem:[%s1 + $0x188] sm:$0xff]
  %v101 = vld [vmem:[%s1 + $0x190] sm:$0xff]
  %v102 = vld [vmem:[%s1 + $0x198] sm:$0xff]
  %v103 = vld [vmem:[%s1 + $0x1a0] sm:$0xff]
  %v104 = vld [vmem:[%s1 + $0x1a8] sm:$0xff]
  %v105 = vld [vmem:[%s1 + $0x1b0] sm:$0xff]
  %v106 = vld [vmem:[%s1 + $0x1b8] sm:$0xff]
  %v107 = vld [vmem:[%s1 + $0x1c0] sm:$0xff]
  %v108 = vld [vmem:[%s1 + $0x1c8] sm:$0xff]
  %v109 = vld [vmem:[%s1 + $0x1d0] sm:$0xff]
  %v110 = vld [vmem:[%s1 + $0x1d8] sm:$0xff]
  %v111 = vld [vmem:[%s1 + $0x1e0] sm:$0xff]
  %v112 = vld [vmem:[%s1 + $0x1e8] sm:$0xff]
  %v113 = vld [vmem:[%s1 + $0x1f0] sm:$0xff]
  %v114 = vld [vmem:[%s1 + $0x1f8] sm:$0xff]
  %v115 = vld [vmem:[%s1 + $0x200] sm:$0xff]
  %v116 = vld [vmem:[%s1 + $0x208] sm:$0xff]
  %v117 = vld [vmem:[%s1 + $0x210] sm:$0xff]
  %v118 = vld [vmem:[%s1 + $0x218] sm:$0xff]
  %v119 = vld [vmem:[%s1 + $0x220] sm:$0xff]
  %v120 = vld [vmem:[%s1 + $0x228] sm:$0xff]
  %v121 = vld [vmem:[%s1 + $0x230] sm:$0xff]
  %v122 = vld [vmem:[%s1 + $0x238] sm:$0xff]
  %v123 = vld [vmem:[%s1 + $0x240] sm:$0xff]
  %v124 = vld [vmem:[%s1 + $0x248] sm:$0xff]
  %v125 = vld [vmem:[%s1 + $0x250] sm:$0xff]
  %v126 = vld [vmem:[%s1 + $0x258] sm:$0xff]
  %v127 = vld [vmem:[%s1 + $0x260] sm:$0xff]
  %v128 = vld [vmem:[%s1 + $0x268] sm:$0xff]
  %v129 = vld [vmem:[%s1 + $0x270] sm:$0xff]
  %v130 = vld [vmem:[%s1 + $0x278] sm:$0xff]
  %v131 = vld [vmem:[%s1 + $0x280] sm:$0xff]
  %v132 = vld [vmem:[%s1 + $0x288] sm:$0xff]
  %v133 = vld [vmem:[%s1 + $0x290] sm:$0xff]
  %v134 = vld [vmem:[%s1 + $0x298] sm:$0xff]
  %v135 = vld [vmem:[%s1 + $0x2a0] sm:$0xff]
  %v136 = vld [vmem:[%s1 + $0x2a8] sm:$0xff]
  %v137 = vld [vmem:[%s1 + $0x2b0] sm:$0xff]
  %v138 = vld [vmem:[%s1 + $0x2b8] sm:$0xff]
  %v139 = vld [vmem:[%s1 + $0x2c0] sm:$0xff]
  %v140 = vld [vmem:[%s1 + $0x2c8] sm:$0xff]
  %v141 = vld [vmem:[%s1 + $0x2d0] sm:$0xff]
  %v142 = vld [vmem:[%s1 + $0x2d8] sm:$0xff]
  %v143 = vld [vmem:[%s1 + $0x2e0] sm:$0xff]
  %v144 = vld [vmem:[%s1 + $0x2e8] sm:$0xff]
  %v145 = vld [vmem:[%s1 + $0x2f0] sm:$0xff]
  %v146 = vld [vmem:[%s1 + $0x2f8] sm:$0xff]
  %v147 = vld [vmem:[%s1 + $0x300] sm:$0xff]
  %v148 = vld [vmem:[%s1 + $0x308] sm:$0xff]
  %v149 = vld [vmem:[%s1 + $0x310] sm:$0xff]
  %v150 = vld [vmem:[%s1 + $0x318] sm:$0xff]
  %v151 = vld [vmem:[%s1 + $0x320] sm:$0xff]
  %v152 = vld [vmem:[%s1 + $0x328] sm:$0xff]
  %v153 = vld [vmem:[%s1 + $0x330] sm:$0xff]
  %v154 = vld [vmem:[%s1 + $0x338] sm:$0xff]
  %v155 = vld [vmem:[%s1 + $0x340] sm:$0xff]
  %v156 = vld [vmem:[%s1 + $0x348] sm:$0xff]
  %v157 = vld [vmem:[%s1 + $0x350] sm:$0xff]
  %v158 = vld [vmem:[%s1 + $0x358] sm:$0xff]
  %v159 = vld [vmem:[%s1 + $0x360] sm:$0xff]
  %v160 = vld [vmem:[%s1 + $0x368] sm:$0xff]
  %v161 = vld [vmem:[%s1 + $0x370] sm:$0xff]
  %v162 = vld [vmem:[%s1 + $0x378] sm:$0xff]
  %v163 = vld [vmem:[%s1 + $0x380] sm:$0xff]
  %v164 = vld [vmem:[%s1 + $0x388] sm:$0xff]
  %v165 = vld [vmem:[%s1 + $0x390] sm:$0xff]
  %v166 = vld [vmem:[%s1 + $0x398] sm:$0xff]
  %v167 = vld [vmem:[%s1 + $0x3a0] sm:$0xff]
  %v168 = vld [vmem:[%s1 + $0x3a8] sm:$0xff]
  %v169 = vld [vmem:[%s1 + $0x3b0] sm:$0xff]
  %v170 = vld [vmem:[%s1 + $0x3b8] sm:$0xff]
  %v171 = vld [vmem:[%s1 + $0x3c0] sm:$0xff]
  %v172 = vld [vmem:[%s1 + $0x3c8] sm:$0xff]
  %v173 = vld [vmem:[%s1 + $0x3d0] sm:$0xff]
  %v174 = vld [vmem:[%s1 + $0x3d8] sm:$0xff]
  %v175 = vld [vmem:[%s1 + $0x3e0] sm:$0xff]
  %v176 = vld [vmem:[%s1 + $0x3e8] sm:$0xff]
  %v177 = vld [vmem:[%s1 + $0x3f0] sm:$0xff]
  %v178 = vld [vmem:[%s1 + $0x3f8] sm:$0xff]
  %v179 = vld [vmem:[%s2] sm:$0x3]
  %v181 = vlaneseq
  %v182 = vshrl.u32 %v181, 7
  %v183 = vsub.s32 0, %v182
  %v184 = vrot.slane %v179, %v183
  %v185 = vlaneseq
  %v186 = vshrl.u32 %v185, 7
  %v187 = vsub.s32 1, %v186
  %v188 = vrot.slane %v179, %v187
  %v319 = vunpack.c.l.b16 %v51
  %v320 = vunpack.c.h.b16 %v51
  %v321 = vunpack.c.l.b16 %v52
  %v322 = vunpack.c.h.b16 %v52
  %v323 = vunpack.c.l.b16 %v53
  %v324 = vunpack.c.h.b16 %v53
  %v325 = vunpack.c.l.b16 %v54
  %v326 = vunpack.c.h.b16 %v54
  %v327 = vunpack.c.l.b16 %v55
  %v328 = vunpack.c.h.b16 %v55
  %v329 = vunpack.c.l.b16 %v56
  %v330 = vunpack.c.h.b16 %v56
  %v331 = vunpack.c.l.b16 %v57
  %v332 = vunpack.c.h.b16 %v57
  %v333 = vunpack.c.l.b16 %v58
  %v334 = vunpack.c.h.b16 %v58
  %v335 = vunpack.c.l.b16 %v59
  %v336 = vunpack.c.h.b16 %v59
  %v337 = vunpack.c.l.b16 %v60
  %v338 = vunpack.c.h.b16 %v60
  %v339 = vunpack.c.l.b16 %v61
  %v340 = vunpack.c.h.b16 %v61
  %v341 = vunpack.c.l.b16 %v62
  %v342 = vunpack.c.h.b16 %v62
  %v343 = vunpack.c.l.b16 %v63
  %v344 = vunpack.c.h.b16 %v63
  %v345 = vunpack.c.l.b16 %v64
  %v346 = vunpack.c.h.b16 %v64
  %v347 = vunpack.c.l.b16 %v65
  %v348 = vunpack.c.h.b16 %v65
  %v349 = vunpack.c.l.b16 %v66
  %v350 = vunpack.c.h.b16 %v66
  %v351 = vunpack.c.l.b16 %v67
  %v352 = vunpack.c.h.b16 %v67
  %v353 = vunpack.c.l.b16 %v68
  %v354 = vunpack.c.h.b16 %v68
  %v355 = vunpack.c.l.b16 %v69
  %v356 = vunpack.c.h.b16 %v69
  %v357 = vunpack.c.l.b16 %v70
  %v358 = vunpack.c.h.b16 %v70
  %v359 = vunpack.c.l.b16 %v71
  %v360 = vunpack.c.h.b16 %v71
  %v361 = vunpack.c.l.b16 %v72
  %v362 = vunpack.c.h.b16 %v72
  %v363 = vunpack.c.l.b16 %v73
  %v364 = vunpack.c.h.b16 %v73
  %v365 = vunpack.c.l.b16 %v74
  %v366 = vunpack.c.h.b16 %v74
  %v367 = vunpack.c.l.b16 %v75
  %v368 = vunpack.c.h.b16 %v75
  %v369 = vunpack.c.l.b16 %v76
  %v370 = vunpack.c.h.b16 %v76
  %v371 = vunpack.c.l.b16 %v77
  %v372 = vunpack.c.h.b16 %v77
  %v373 = vunpack.c.l.b16 %v78
  %v374 = vunpack.c.h.b16 %v78
  %v375 = vunpack.c.l.b16 %v79
  %v376 = vunpack.c.h.b16 %v79
  %v377 = vunpack.c.l.b16 %v80
  %v378 = vunpack.c.h.b16 %v80
  %v379 = vunpack.c.l.b16 %v81
  %v380 = vunpack.c.h.b16 %v81
  %v381 = vunpack.c.l.b16 %v82
  %v382 = vunpack.c.h.b16 %v82
  %v383 = vunpack.c.l.b16 %v83
  %v384 = vunpack.c.h.b16 %v83
  %v385 = vunpack.c.l.b16 %v84
  %v386 = vunpack.c.h.b16 %v84
  %v387 = vunpack.c.l.b16 %v85
  %v388 = vunpack.c.h.b16 %v85
  %v389 = vunpack.c.l.b16 %v86
  %v390 = vunpack.c.h.b16 %v86
  %v391 = vunpack.c.l.b16 %v87
  %v392 = vunpack.c.h.b16 %v87
  %v393 = vunpack.c.l.b16 %v88
  %v394 = vunpack.c.h.b16 %v88
  %v395 = vunpack.c.l.b16 %v89
  %v396 = vunpack.c.h.b16 %v89
  %v397 = vunpack.c.l.b16 %v90
  %v398 = vunpack.c.h.b16 %v90
  %v399 = vunpack.c.l.b16 %v91
  %v400 = vunpack.c.h.b16 %v91
  %v401 = vunpack.c.l.b16 %v92
  %v402 = vunpack.c.h.b16 %v92
  %v403 = vunpack.c.l.b16 %v93
  %v404 = vunpack.c.h.b16 %v93
  %v405 = vunpack.c.l.b16 %v94
  %v406 = vunpack.c.h.b16 %v94
  %v407 = vunpack.c.l.b16 %v95
  %v408 = vunpack.c.h.b16 %v95
  %v409 = vunpack.c.l.b16 %v96
  %v410 = vunpack.c.h.b16 %v96
  %v411 = vunpack.c.l.b16 %v97
  %v412 = vunpack.c.h.b16 %v97
  %v413 = vunpack.c.l.b16 %v98
  %v414 = vunpack.c.h.b16 %v98
  %v415 = vunpack.c.l.b16 %v99
  %v416 = vunpack.c.h.b16 %v99
  %v417 = vunpack.c.l.b16 %v100
  %v418 = vunpack.c.h.b16 %v100
  %v419 = vunpack.c.l.b16 %v101
  %v420 = vunpack.c.h.b16 %v101
  %v421 = vunpack.c.l.b16 %v102
  %v422 = vunpack.c.h.b16 %v102
  %v423 = vunpack.c.l.b16 %v103
  %v424 = vunpack.c.h.b16 %v103
  %v425 = vunpack.c.l.b16 %v104
  %v426 = vunpack.c.h.b16 %v104
  %v427 = vunpack.c.l.b16 %v105
  %v428 = vunpack.c.h.b16 %v105
  %v429 = vunpack.c.l.b16 %v106
  %v430 = vunpack.c.h.b16 %v106
  %v431 = vunpack.c.l.b16 %v107
  %v432 = vunpack.c.h.b16 %v107
  %v433 = vunpack.c.l.b16 %v108
  %v434 = vunpack.c.h.b16 %v108
  %v435 = vunpack.c.l.b16 %v109
  %v436 = vunpack.c.h.b16 %v109
  %v437 = vunpack.c.l.b16 %v110
  %v438 = vunpack.c.h.b16 %v110
  %v439 = vunpack.c.l.b16 %v111
  %v440 = vunpack.c.h.b16 %v111
  %v441 = vunpack.c.l.b16 %v112
  %v442 = vunpack.c.h.b16 %v112
  %v443 = vunpack.c.l.b16 %v113
  %v444 = vunpack.c.h.b16 %v113
  %v445 = vunpack.c.l.b16 %v114
  %v446 = vunpack.c.h.b16 %v114
  %v447 = vunpack.c.l.b16 %v115
  %v448 = vunpack.c.h.b16 %v115
  %v449 = vunpack.c.l.b16 %v116
  %v450 = vunpack.c.h.b16 %v116
  %v451 = vunpack.c.l.b16 %v117
  %v452 = vunpack.c.h.b16 %v117
  %v453 = vunpack.c.l.b16 %v118
  %v454 = vunpack.c.h.b16 %v118
  %v455 = vunpack.c.l.b16 %v119
  %v456 = vunpack.c.h.b16 %v119
  %v457 = vunpack.c.l.b16 %v120
  %v458 = vunpack.c.h.b16 %v120
  %v459 = vunpack.c.l.b16 %v121
  %v460 = vunpack.c.h.b16 %v121
  %v461 = vunpack.c.l.b16 %v122
  %v462 = vunpack.c.h.b16 %v122
  %v463 = vunpack.c.l.b16 %v123
  %v464 = vunpack.c.h.b16 %v123
  %v465 = vunpack.c.l.b16 %v124
  %v466 = vunpack.c.h.b16 %v124
  %v467 = vunpack.c.l.b16 %v125
  %v468 = vunpack.c.h.b16 %v125
  %v469 = vunpack.c.l.b16 %v126
  %v470 = vunpack.c.h.b16 %v126
  %v471 = vunpack.c.l.b16 %v127
  %v472 = vunpack.c.h.b16 %v127
  %v473 = vunpack.c.l.b16 %v128
  %v474 = vunpack.c.h.b16 %v128
  %v475 = vunpack.c.l.b16 %v129
  %v476 = vunpack.c.h.b16 %v129
  %v477 = vunpack.c.l.b16 %v130
  %v478 = vunpack.c.h.b16 %v130
  %v479 = vunpack.c.l.b16 %v131
  %v480 = vunpack.c.h.b16 %v131
  %v481 = vunpack.c.l.b16 %v132
  %v482 = vunpack.c.h.b16 %v132
  %v483 = vunpack.c.l.b16 %v133
  %v484 = vunpack.c.h.b16 %v133
  %v485 = vunpack.c.l.b16 %v134
  %v486 = vunpack.c.h.b16 %v134
  %v487 = vunpack.c.l.b16 %v135
  %v488 = vunpack.c.h.b16 %v135
  %v489 = vunpack.c.l.b16 %v136
  %v490 = vunpack.c.h.b16 %v136
  %v491 = vunpack.c.l.b16 %v137
  %v492 = vunpack.c.h.b16 %v137
  %v493 = vunpack.c.l.b16 %v138
  %v494 = vunpack.c.h.b16 %v138
  %v495 = vunpack.c.l.b16 %v139
  %v496 = vunpack.c.h.b16 %v139
  %v497 = vunpack.c.l.b16 %v140
  %v498 = vunpack.c.h.b16 %v140
  %v499 = vunpack.c.l.b16 %v141
  %v500 = vunpack.c.h.b16 %v141
  %v501 = vunpack.c.l.b16 %v142
  %v502 = vunpack.c.h.b16 %v142
  %v503 = vunpack.c.l.b16 %v143
  %v504 = vunpack.c.h.b16 %v143
  %v505 = vunpack.c.l.b16 %v144
  %v506 = vunpack.c.h.b16 %v144
  %v507 = vunpack.c.l.b16 %v145
  %v508 = vunpack.c.h.b16 %v145
  %v509 = vunpack.c.l.b16 %v146
  %v510 = vunpack.c.h.b16 %v146
  %v511 = vunpack.c.l.b16 %v147
  %v512 = vunpack.c.h.b16 %v147
  %v513 = vunpack.c.l.b16 %v148
  %v514 = vunpack.c.h.b16 %v148
  %v515 = vunpack.c.l.b16 %v149
  %v516 = vunpack.c.h.b16 %v149
  %v517 = vunpack.c.l.b16 %v150
  %v518 = vunpack.c.h.b16 %v150
  %v519 = vunpack.c.l.b16 %v151
  %v520 = vunpack.c.h.b16 %v151
  %v521 = vunpack.c.l.b16 %v152
  %v522 = vunpack.c.h.b16 %v152
  %v523 = vunpack.c.l.b16 %v153
  %v524 = vunpack.c.h.b16 %v153
  %v525 = vunpack.c.l.b16 %v154
  %v526 = vunpack.c.h.b16 %v154
  %v527 = vunpack.c.l.b16 %v155
  %v528 = vunpack.c.h.b16 %v155
  %v529 = vunpack.c.l.b16 %v156
  %v530 = vunpack.c.h.b16 %v156
  %v531 = vunpack.c.l.b16 %v157
  %v532 = vunpack.c.h.b16 %v157
  %v533 = vunpack.c.l.b16 %v158
  %v534 = vunpack.c.h.b16 %v158
  %v535 = vunpack.c.l.b16 %v159
  %v536 = vunpack.c.h.b16 %v159
  %v537 = vunpack.c.l.b16 %v160
  %v538 = vunpack.c.h.b16 %v160
  %v539 = vunpack.c.l.b16 %v161
  %v540 = vunpack.c.h.b16 %v161
  %v541 = vunpack.c.l.b16 %v162
  %v542 = vunpack.c.h.b16 %v162
  %v543 = vunpack.c.l.b16 %v163
  %v544 = vunpack.c.h.b16 %v163
  %v545 = vunpack.c.l.b16 %v164
  %v546 = vunpack.c.h.b16 %v164
  %v547 = vunpack.c.l.b16 %v165
  %v548 = vunpack.c.h.b16 %v165
  %v549 = vunpack.c.l.b16 %v166
  %v550 = vunpack.c.h.b16 %v166
  %v551 = vunpack.c.l.b16 %v167
  %v552 = vunpack.c.h.b16 %v167
  %v553 = vunpack.c.l.b16 %v168
  %v554 = vunpack.c.h.b16 %v168
  %v555 = vunpack.c.l.b16 %v169
  %v556 = vunpack.c.h.b16 %v169
  %v557 = vunpack.c.l.b16 %v170
  %v558 = vunpack.c.h.b16 %v170
  %v559 = vunpack.c.l.b16 %v171
  %v560 = vunpack.c.h.b16 %v171
  %v561 = vunpack.c.l.b16 %v172
  %v562 = vunpack.c.h.b16 %v172
  %v563 = vunpack.c.l.b16 %v173
  %v564 = vunpack.c.h.b16 %v173
  %v565 = vunpack.c.l.b16 %v174
  %v566 = vunpack.c.h.b16 %v174
  %v567 = vunpack.c.l.b16 %v175
  %v568 = vunpack.c.h.b16 %v175
  %v569 = vunpack.c.l.b16 %v176
  %v570 = vunpack.c.h.b16 %v176
  %v571 = vunpack.c.l.b16 %v177
  %v572 = vunpack.c.h.b16 %v177
  %v573 = vunpack.c.l.b16 %v178
  %v574 = vunpack.c.h.b16 %v178
  %v575 = vpack.c.b16 %v321, %v319
  %v576 = vpack.c.b16 %v322, %v320
  %v577 = vpack.c.b16 %v325, %v323
  %v578 = vpack.c.b16 %v326, %v324
  %v579 = vpack.c.b16 %v329, %v327
  %v580 = vpack.c.b16 %v330, %v328
  %v581 = vpack.c.b16 %v333, %v331
  %v582 = vpack.c.b16 %v334, %v332
  %v583 = vpack.c.b16 %v337, %v335
  %v584 = vpack.c.b16 %v338, %v336
  %v585 = vpack.c.b16 %v341, %v339
  %v586 = vpack.c.b16 %v342, %v340
  %v587 = vpack.c.b16 %v345, %v343
  %v588 = vpack.c.b16 %v346, %v344
  %v589 = vpack.c.b16 %v349, %v347
  %v590 = vpack.c.b16 %v350, %v348
  %v591 = vpack.c.b16 %v353, %v351
  %v592 = vpack.c.b16 %v354, %v352
  %v593 = vpack.c.b16 %v357, %v355
  %v594 = vpack.c.b16 %v358, %v356
  %v595 = vpack.c.b16 %v361, %v359
  %v596 = vpack.c.b16 %v362, %v360
  %v597 = vpack.c.b16 %v365, %v363
  %v598 = vpack.c.b16 %v366, %v364
  %v599 = vpack.c.b16 %v369, %v367
  %v600 = vpack.c.b16 %v370, %v368
  %v601 = vpack.c.b16 %v373, %v371
  %v602 = vpack.c.b16 %v374, %v372
  %v603 = vpack.c.b16 %v377, %v375
  %v604 = vpack.c.b16 %v378, %v376
  %v605 = vpack.c.b16 %v381, %v379
  %v606 = vpack.c.b16 %v382, %v380
  %v607 = vpack.c.b16 %v385, %v383
  %v608 = vpack.c.b16 %v386, %v384
  %v609 = vpack.c.b16 %v389, %v387
  %v610 = vpack.c.b16 %v390, %v388
  %v611 = vpack.c.b16 %v393, %v391
  %v612 = vpack.c.b16 %v394, %v392
  %v613 = vpack.c.b16 %v397, %v395
  %v614 = vpack.c.b16 %v398, %v396
  %v615 = vpack.c.b16 %v401, %v399
  %v616 = vpack.c.b16 %v402, %v400
  %v617 = vpack.c.b16 %v405, %v403
  %v618 = vpack.c.b16 %v406, %v404
  %v619 = vpack.c.b16 %v409, %v407
  %v620 = vpack.c.b16 %v410, %v408
  %v621 = vpack.c.b16 %v413, %v411
  %v622 = vpack.c.b16 %v414, %v412
  %v623 = vpack.c.b16 %v417, %v415
  %v624 = vpack.c.b16 %v418, %v416
  %v625 = vpack.c.b16 %v421, %v419
  %v626 = vpack.c.b16 %v422, %v420
  %v627 = vpack.c.b16 %v425, %v423
  %v628 = vpack.c.b16 %v426, %v424
  %v629 = vpack.c.b16 %v429, %v427
  %v630 = vpack.c.b16 %v430, %v428
  %v631 = vpack.c.b16 %v433, %v431
  %v632 = vpack.c.b16 %v434, %v432
  %v633 = vpack.c.b16 %v437, %v435
  %v634 = vpack.c.b16 %v438, %v436
  %v635 = vpack.c.b16 %v441, %v439
  %v636 = vpack.c.b16 %v442, %v440
  %v637 = vpack.c.b16 %v445, %v443
  %v638 = vpack.c.b16 %v446, %v444
  %v639 = vpack.c.b16 %v449, %v447
  %v640 = vpack.c.b16 %v450, %v448
  %v641 = vpack.c.b16 %v453, %v451
  %v642 = vpack.c.b16 %v454, %v452
  %v643 = vpack.c.b16 %v457, %v455
  %v644 = vpack.c.b16 %v458, %v456
  %v645 = vpack.c.b16 %v461, %v459
  %v646 = vpack.c.b16 %v462, %v460
  %v647 = vpack.c.b16 %v465, %v463
  %v648 = vpack.c.b16 %v466, %v464
  %v649 = vpack.c.b16 %v469, %v467
  %v650 = vpack.c.b16 %v470, %v468
  %v651 = vpack.c.b16 %v473, %v471
  %v652 = vpack.c.b16 %v474, %v472
  %v653 = vpack.c.b16 %v477, %v475
  %v654 = vpack.c.b16 %v478, %v476
  %v655 = vpack.c.b16 %v481, %v479
  %v656 = vpack.c.b16 %v482, %v480
  %v657 = vpack.c.b16 %v485, %v483
  %v658 = vpack.c.b16 %v486, %v484
  %v659 = vpack.c.b16 %v489, %v487
  %v660 = vpack.c.b16 %v490, %v488
  %v661 = vpack.c.b16 %v493, %v491
  %v662 = vpack.c.b16 %v494, %v492
  %v663 = vpack.c.b16 %v497, %v495
  %v664 = vpack.c.b16 %v498, %v496
  %v665 = vpack.c.b16 %v501, %v499
  %v666 = vpack.c.b16 %v502, %v500
  %v667 = vpack.c.b16 %v505, %v503
  %v668 = vpack.c.b16 %v506, %v504
  %v669 = vpack.c.b16 %v509, %v507
  %v670 = vpack.c.b16 %v510, %v508
  %v671 = vpack.c.b16 %v513, %v511
  %v672 = vpack.c.b16 %v514, %v512
  %v673 = vpack.c.b16 %v517, %v515
  %v674 = vpack.c.b16 %v518, %v516
  %v675 = vpack.c.b16 %v521, %v519
  %v676 = vpack.c.b16 %v522, %v520
  %v677 = vpack.c.b16 %v525, %v523
  %v678 = vpack.c.b16 %v526, %v524
  %v679 = vpack.c.b16 %v529, %v527
  %v680 = vpack.c.b16 %v530, %v528
  %v681 = vpack.c.b16 %v533, %v531
  %v682 = vpack.c.b16 %v534, %v532
  %v683 = vpack.c.b16 %v537, %v535
  %v684 = vpack.c.b16 %v538, %v536
  %v685 = vpack.c.b16 %v541, %v539
  %v686 = vpack.c.b16 %v542, %v540
  %v687 = vpack.c.b16 %v545, %v543
  %v688 = vpack.c.b16 %v546, %v544
  %v689 = vpack.c.b16 %v549, %v547
  %v690 = vpack.c.b16 %v550, %v548
  %v691 = vpack.c.b16 %v553, %v551
  %v692 = vpack.c.b16 %v554, %v552
  %v693 = vpack.c.b16 %v557, %v555
  %v694 = vpack.c.b16 %v558, %v556
  %v695 = vpack.c.b16 %v561, %v559
  %v696 = vpack.c.b16 %v562, %v560
  %v697 = vpack.c.b16 %v565, %v563
  %v698 = vpack.c.b16 %v566, %v564
  %v699 = vpack.c.b16 %v569, %v567
  %v700 = vpack.c.b16 %v570, %v568
  %v701 = vpack.c.b16 %v573, %v571
  %v702 = vpack.c.b16 %v574, %v572
  %831 = vmatprep.subr.bf16.mxu0 %v576
  %832 = vmatpush1.bf16.msra.mxu0 %v575
  %833 = vmatprep.subr.bf16.mxu0 %v578
  %834 = vmatpush1.bf16.msra.mxu0 %v577
  %835 = vmatprep.subr.bf16.mxu0 %v580
  %836 = vmatpush1.bf16.msra.mxu0 %v579
  %837 = vmatprep.subr.bf16.mxu0 %v582
  %838 = vmatpush1.bf16.msra.mxu0 %v581
  %839 = vmatprep.subr.bf16.mxu0 %v584
  %840 = vmatpush1.bf16.msra.mxu0 %v583
  %841 = vmatprep.subr.bf16.mxu0 %v586
  %842 = vmatpush1.bf16.msra.mxu0 %v585
  %843 = vmatprep.subr.bf16.mxu0 %v588
  %844 = vmatpush1.bf16.msra.mxu0 %v587
  %845 = vmatprep.subr.bf16.mxu0 %v590
  %846 = vmatpush1.bf16.msra.mxu0 %v589
  %847 = vmatprep.subr.bf16.mxu0 %v592
  %848 = vmatpush1.bf16.msra.mxu0 %v591
  %849 = vmatprep.subr.bf16.mxu0 %v594
  %850 = vmatpush1.bf16.msra.mxu0 %v593
  %851 = vmatprep.subr.bf16.mxu0 %v596
  %852 = vmatpush1.bf16.msra.mxu0 %v595
  %853 = vmatprep.subr.bf16.mxu0 %v598
  %854 = vmatpush1.bf16.msra.mxu0 %v597
  %855 = vmatprep.subr.bf16.mxu0 %v600
  %856 = vmatpush1.bf16.msra.mxu0 %v599
  %857 = vmatprep.subr.bf16.mxu0 %v602
  %858 = vmatpush1.bf16.msra.mxu0 %v601
  %859 = vmatprep.subr.bf16.mxu0 %v604
  %860 = vmatpush1.bf16.msra.mxu0 %v603
  %861 = vmatprep.subr.bf16.mxu0 %v606
  %862 = vmatpush1.bf16.msra.mxu0 %v605
  %863 = vmatprep.mubr.bf16.mxu0 %v44
  %864 = vmatmul.mubr.bf16.gmra.mrb[0].mxu0 %v43
  %v865 = vpop.f32.mrb[0].mxu0
  %v866 = vadd.f32 %v184, %v865
  %v867 = vpop.f32.mrb[0].mxu0
  %v868 = vadd.f32 %v188, %v867
  %v869 = vpop.f32.mrb[0].mxu0
  %v870 = vadd.f32 %v184, %v869
  %v871 = vpop.f32.mrb[0].mxu0
  %v872 = vadd.f32 %v188, %v871
  %873 = vdwg.mxu0
  %874 = vmatprep.subr.bf16.mxu0 %v608
  %875 = vmatpush1.bf16.msra.mxu0 %v607
  %876 = vmatprep.subr.bf16.mxu0 %v610
  %877 = vmatpush1.bf16.msra.mxu0 %v609
  %878 = vmatprep.subr.bf16.mxu0 %v612
  %879 = vmatpush1.bf16.msra.mxu0 %v611
  %880 = vmatprep.subr.bf16.mxu0 %v614
  %881 = vmatpush1.bf16.msra.mxu0 %v613
  %882 = vmatprep.subr.bf16.mxu0 %v616
  %883 = vmatpush1.bf16.msra.mxu0 %v615
  %884 = vmatprep.subr.bf16.mxu0 %v618
  %885 = vmatpush1.bf16.msra.mxu0 %v617
  %886 = vmatprep.subr.bf16.mxu0 %v620
  %887 = vmatpush1.bf16.msra.mxu0 %v619
  %888 = vmatprep.subr.bf16.mxu0 %v622
  %889 = vmatpush1.bf16.msra.mxu0 %v621
  %890 = vmatprep.subr.bf16.mxu0 %v624
  %891 = vmatpush1.bf16.msra.mxu0 %v623
  %892 = vmatprep.subr.bf16.mxu0 %v626
  %893 = vmatpush1.bf16.msra.mxu0 %v625
  %894 = vmatprep.subr.bf16.mxu0 %v628
  %895 = vmatpush1.bf16.msra.mxu0 %v627
  %896 = vmatprep.subr.bf16.mxu0 %v630
  %897 = vmatpush1.bf16.msra.mxu0 %v629
  %898 = vmatprep.subr.bf16.mxu0 %v632
  %899 = vmatpush1.bf16.msra.mxu0 %v631
  %900 = vmatprep.subr.bf16.mxu0 %v634
  %901 = vmatpush1.bf16.msra.mxu0 %v633
  %902 = vmatprep.subr.bf16.mxu0 %v636
  %903 = vmatpush1.bf16.msra.mxu0 %v635
  %904 = vmatprep.subr.bf16.mxu0 %v638
  %905 = vmatpush1.bf16.msra.mxu0 %v637
  %906 = vmatprep.mubr.bf16.mxu0 %v46
  %907 = vmatmul.mubr.bf16.gmra.mrb[0].mxu0 %v45
  %v908 = vpop.f32.mrb[0].mxu0
  %v909 = vadd.f32 %v866, %v908
  %v910 = vpop.f32.mrb[0].mxu0
  %v911 = vadd.f32 %v868, %v910
  %v912 = vpop.f32.mrb[0].mxu0
  %v913 = vadd.f32 %v870, %v912
  %v914 = vpop.f32.mrb[0].mxu0
  %v915 = vadd.f32 %v872, %v914
  %916 = vdwg.mxu0
  %917 = vmatprep.subr.bf16.mxu0 %v640
  %918 = vmatpush1.bf16.msra.mxu0 %v639
  %919 = vmatprep.subr.bf16.mxu0 %v642
  %920 = vmatpush1.bf16.msra.mxu0 %v641
  %921 = vmatprep.subr.bf16.mxu0 %v644
  %922 = vmatpush1.bf16.msra.mxu0 %v643
  %923 = vmatprep.subr.bf16.mxu0 %v646
  %924 = vmatpush1.bf16.msra.mxu0 %v645
  %925 = vmatprep.subr.bf16.mxu0 %v648
  %926 = vmatpush1.bf16.msra.mxu0 %v647
  %927 = vmatprep.subr.bf16.mxu0 %v650
  %928 = vmatpush1.bf16.msra.mxu0 %v649
  %929 = vmatprep.subr.bf16.mxu0 %v652
  %930 = vmatpush1.bf16.msra.mxu0 %v651
  %931 = vmatprep.subr.bf16.mxu0 %v654
  %932 = vmatpush1.bf16.msra.mxu0 %v653
  %933 = vmatprep.subr.bf16.mxu0 %v656
  %934 = vmatpush1.bf16.msra.mxu0 %v655
  %935 = vmatprep.subr.bf16.mxu0 %v658
  %936 = vmatpush1.bf16.msra.mxu0 %v657
  %937 = vmatprep.subr.bf16.mxu0 %v660
  %938 = vmatpush1.bf16.msra.mxu0 %v659
  %939 = vmatprep.subr.bf16.mxu0 %v662
  %940 = vmatpush1.bf16.msra.mxu0 %v661
  %941 = vmatprep.subr.bf16.mxu0 %v664
  %942 = vmatpush1.bf16.msra.mxu0 %v663
  %943 = vmatprep.subr.bf16.mxu0 %v666
  %944 = vmatpush1.bf16.msra.mxu0 %v665
  %945 = vmatprep.subr.bf16.mxu0 %v668
  %946 = vmatpush1.bf16.msra.mxu0 %v667
  %947 = vmatprep.subr.bf16.mxu0 %v670
  %948 = vmatpush1.bf16.msra.mxu0 %v669
  %949 = vmatprep.mubr.bf16.mxu0 %v48
  %950 = vmatmul.mubr.bf16.gmra.mrb[0].mxu0 %v47
  %v951 = vpop.f32.mrb[0].mxu0
  %v952 = vadd.f32 %v909, %v951
  %v953 = vpop.f32.mrb[0].mxu0
  %v954 = vadd.f32 %v911, %v953
  %v955 = vpop.f32.mrb[0].mxu0
  %v956 = vadd.f32 %v913, %v955
  %v957 = vpop.f32.mrb[0].mxu0
  %v958 = vadd.f32 %v915, %v957
  %959 = vdwg.mxu0
  %960 = vmatprep.subr.bf16.mxu0 %v672
  %961 = vmatpush1.bf16.msra.mxu0 %v671
  %962 = vmatprep.subr.bf16.mxu0 %v674
  %963 = vmatpush1.bf16.msra.mxu0 %v673
  %964 = vmatprep.subr.bf16.mxu0 %v676
  %965 = vmatpush1.bf16.msra.mxu0 %v675
  %966 = vmatprep.subr.bf16.mxu0 %v678
  %967 = vmatpush1.bf16.msra.mxu0 %v677
  %968 = vmatprep.subr.bf16.mxu0 %v680
  %969 = vmatpush1.bf16.msra.mxu0 %v679
  %970 = vmatprep.subr.bf16.mxu0 %v682
  %971 = vmatpush1.bf16.msra.mxu0 %v681
  %972 = vmatprep.subr.bf16.mxu0 %v684
  %973 = vmatpush1.bf16.msra.mxu0 %v683
  %974 = vmatprep.subr.bf16.mxu0 %v686
  %975 = vmatpush1.bf16.msra.mxu0 %v685
  %976 = vmatprep.subr.bf16.mxu0 %v688
  %977 = vmatpush1.bf16.msra.mxu0 %v687
  %978 = vmatprep.subr.bf16.mxu0 %v690
  %979 = vmatpush1.bf16.msra.mxu0 %v689
  %980 = vmatprep.subr.bf16.mxu0 %v692
  %981 = vmatpush1.bf16.msra.mxu0 %v691
  %982 = vmatprep.subr.bf16.mxu0 %v694
  %983 = vmatpush1.bf16.msra.mxu0 %v693
  %984 = vmatprep.subr.bf16.mxu0 %v696
  %985 = vmatpush1.bf16.msra.mxu0 %v695
  %986 = vmatprep.subr.bf16.mxu0 %v698
  %987 = vmatpush1.bf16.msra.mxu0 %v697
  %988 = vmatprep.subr.bf16.mxu0 %v700
  %989 = vmatpush1.bf16.msra.mxu0 %v699
  %990 = vmatprep.subr.bf16.mxu0 %v702
  %991 = vmatpush1.bf16.msra.mxu0 %v701
  %992 = vmatprep.mubr.bf16.mxu0 %v50
  %993 = vmatmul.mubr.bf16.gmra.mrb[0].mxu0 %v49
  %v994 = vpop.f32.mrb[0].mxu0
  %v995 = vadd.f32 %v952, %v994
  %v996 = vpop.f32.mrb[0].mxu0
  %v997 = vadd.f32 %v954, %v996
  %v998 = vpop.f32.mrb[0].mxu0
  %v999 = vadd.f32 %v956, %v998
  %v1000 = vpop.f32.mrb[0].mxu0
  %v1001 = vadd.f32 %v958, %v1000
  %1002 = vdwg.mxu0
  %v1003 = vmax.f32 %v995, 0.0
  %v1004 = vmax.f32 %v997, 0.0
  %v1005 = vmax.f32 %v999, 0.0
  %v1006 = vmax.f32 %v1001, 0.0
  %v1007 = vpack.c.bf16 %v1005, %v1003
  %v1008 = vpack.c.bf16 %v1006, %v1004
  %v1009 = vld [vmem:[%s3] sm:$0xf]
  %v1010 = vld [vmem:[%s3 + $0x4] sm:$0xf]
  %v1011 = vld [vmem:[%s3 + $0x8] sm:$0xf]
  %v1012 = vld [vmem:[%s3 + $0xc] sm:$0xf]
  %v1013 = vld [vmem:[%s3 + $0x10] sm:$0xf]
  %v1014 = vld [vmem:[%s3 + $0x14] sm:$0xf]
  %v1015 = vld [vmem:[%s3 + $0x18] sm:$0xf]
  %v1016 = vld [vmem:[%s3 + $0x1c] sm:$0xf]
  %v1017 = vld [vmem:[%s3 + $0x20] sm:$0xf]
  %v1018 = vld [vmem:[%s3 + $0x24] sm:$0xf]
  %v1019 = vld [vmem:[%s3 + $0x28] sm:$0xf]
  %v1020 = vld [vmem:[%s3 + $0x2c] sm:$0xf]
  %v1021 = vld [vmem:[%s3 + $0x30] sm:$0xf]
  %v1022 = vld [vmem:[%s3 + $0x34] sm:$0xf]
  %v1023 = vld [vmem:[%s3 + $0x38] sm:$0xf]
  %v1024 = vld [vmem:[%s3 + $0x3c] sm:$0xf]
  %v1025 = vld [vmem:[%s3 + $0x40] sm:$0xf]
  %v1026 = vld [vmem:[%s3 + $0x44] sm:$0xf]
  %v1027 = vld [vmem:[%s3 + $0x48] sm:$0xf]
  %v1028 = vld [vmem:[%s3 + $0x4c] sm:$0xf]
  %v1029 = vld [vmem:[%s3 + $0x50] sm:$0xf]
  %v1030 = vld [vmem:[%s3 + $0x54] sm:$0xf]
  %v1031 = vld [vmem:[%s3 + $0x58] sm:$0xf]
  %v1032 = vld [vmem:[%s3 + $0x5c] sm:$0xf]
  %v1033 = vld [vmem:[%s3 + $0x60] sm:$0xf]
  %v1034 = vld [vmem:[%s3 + $0x64] sm:$0xf]
  %v1035 = vld [vmem:[%s3 + $0x68] sm:$0xf]
  %v1036 = vld [vmem:[%s3 + $0x6c] sm:$0xf]
  %v1037 = vld [vmem:[%s3 + $0x70] sm:$0xf]
  %v1038 = vld [vmem:[%s3 + $0x74] sm:$0xf]
  %v1039 = vld [vmem:[%s3 + $0x78] sm:$0xf]
  %v1040 = vld [vmem:[%s3 + $0x7c] sm:$0xf]
  %v1041 = vld [vmem:[%s4] sm:$0x1]
  %v1043 = vlaneseq
  %v1044 = vshrl.u32 %v1043, 7
  %v1045 = vsub.s32 0, %v1044
  %v1046 = vrot.slane %v1041, %v1045
  %v1080 = vunpack.c.l.b16 %v1009
  %v1081 = vunpack.c.l.b16 %v1010
  %v1082 = vunpack.c.l.b16 %v1011
  %v1083 = vunpack.c.l.b16 %v1012
  %v1084 = vunpack.c.l.b16 %v1013
  %v1085 = vunpack.c.l.b16 %v1014
  %v1086 = vunpack.c.l.b16 %v1015
  %v1087 = vunpack.c.l.b16 %v1016
  %v1088 = vunpack.c.l.b16 %v1017
  %v1089 = vunpack.c.l.b16 %v1018
  %v1090 = vunpack.c.l.b16 %v1019
  %v1091 = vunpack.c.l.b16 %v1020
  %v1092 = vunpack.c.l.b16 %v1021
  %v1093 = vunpack.c.l.b16 %v1022
  %v1094 = vunpack.c.l.b16 %v1023
  %v1095 = vunpack.c.l.b16 %v1024
  %v1096 = vunpack.c.l.b16 %v1025
  %v1097 = vunpack.c.l.b16 %v1026
  %v1098 = vunpack.c.l.b16 %v1027
  %v1099 = vunpack.c.l.b16 %v1028
  %v1100 = vunpack.c.l.b16 %v1029
  %v1101 = vunpack.c.l.b16 %v1030
  %v1102 = vunpack.c.l.b16 %v1031
  %v1103 = vunpack.c.l.b16 %v1032
  %v1104 = vunpack.c.l.b16 %v1033
  %v1105 = vunpack.c.l.b16 %v1034
  %v1106 = vunpack.c.l.b16 %v1035
  %v1107 = vunpack.c.l.b16 %v1036
  %v1108 = vunpack.c.l.b16 %v1037
  %v1109 = vunpack.c.l.b16 %v1038
  %v1110 = vunpack.c.l.b16 %v1039
  %v1111 = vunpack.c.l.b16 %v1040
  %v1112 = vpack.c.b16 %v1081, %v1080
  %v1113 = vpack.c.b16 %v1083, %v1082
  %v1114 = vpack.c.b16 %v1085, %v1084
  %v1115 = vpack.c.b16 %v1087, %v1086
  %v1116 = vpack.c.b16 %v1089, %v1088
  %v1117 = vpack.c.b16 %v1091, %v1090
  %v1118 = vpack.c.b16 %v1093, %v1092
  %v1119 = vpack.c.b16 %v1095, %v1094
  %v1120 = vpack.c.b16 %v1097, %v1096
  %v1121 = vpack.c.b16 %v1099, %v1098
  %v1122 = vpack.c.b16 %v1101, %v1100
  %v1123 = vpack.c.b16 %v1103, %v1102
  %v1124 = vpack.c.b16 %v1105, %v1104
  %v1125 = vpack.c.b16 %v1107, %v1106
  %v1126 = vpack.c.b16 %v1109, %v1108
  %v1127 = vpack.c.b16 %v1111, %v1110
  %1144 = vmatprep.subr.bf16.mxu0 0
  %1145 = vmatpush1.bf16.msra.mxu0 %v1112
  %1146 = vmatprep.subr.bf16.mxu0 0
  %1147 = vmatpush1.bf16.msra.mxu0 %v1113
  %1148 = vmatprep.subr.bf16.mxu0 0
  %1149 = vmatpush1.bf16.msra.mxu0 %v1114
  %1150 = vmatprep.subr.bf16.mxu0 0
  %1151 = vmatpush1.bf16.msra.mxu0 %v1115
  %1152 = vmatprep.subr.bf16.mxu0 0
  %1153 = vmatpush1.bf16.msra.mxu0 %v1116
  %1154 = vmatprep.subr.bf16.mxu0 0
  %1155 = vmatpush1.bf16.msra.mxu0 %v1117
  %1156 = vmatprep.subr.bf16.mxu0 0
  %1157 = vmatpush1.bf16.msra.mxu0 %v1118
  %1158 = vmatprep.subr.bf16.mxu0 0
  %1159 = vmatpush1.bf16.msra.mxu0 %v1119
  %1160 = vmatprep.subr.bf16.mxu0 0
  %1161 = vmatpush1.bf16.msra.mxu0 %v1120
  %1162 = vmatprep.subr.bf16.mxu0 0
  %1163 = vmatpush1.bf16.msra.mxu0 %v1121
  %1164 = vmatprep.subr.bf16.mxu0 0
  %1165 = vmatpush1.bf16.msra.mxu0 %v1122
  %1166 = vmatprep.subr.bf16.mxu0 0
  %1167 = vmatpush1.bf16.msra.mxu0 %v1123
  %1168 = vmatprep.subr.bf16.mxu0 0
  %1169 = vmatpush1.bf16.msra.mxu0 %v1124
  %1170 = vmatprep.subr.bf16.mxu0 0
  %1171 = vmatpush1.bf16.msra.mxu0 %v1125
  %1172 = vmatprep.subr.bf16.mxu0 0
  %1173 = vmatpush1.bf16.msra.mxu0 %v1126
  %1174 = vmatprep.subr.bf16.mxu0 0
  %1175 = vmatpush1.bf16.msra.mxu0 %v1127
  %1176 = vmatprep.mubr.bf16.mxu0 %v1008
  %1177 = vmatmul.mubr.bf16.gmra.mrb[0].mxu0 %v1007
  %v1178 = vpop.f32.mrb[0].mxu0
  %v1179 = vadd.f32 %v1046, %v1178
  %v1180 = vpop.f32.mrb[0].mxu0
  %v1181 = vpop.f32.mrb[0].mxu0
  %v1182 = vadd.f32 %v1046, %v1181
  %v1183 = vpop.f32.mrb[0].mxu0
  %1184 = vdwg.mxu0
  %v1185 = vmax.f32 %v1179, 0.0
  %v1186 = vmax.f32 %v1182, 0.0
  %v1187 = vpack.c.bf16 %v1186, %v1185
  %v1188 = vld [vmem:[%s5] sm:$0xf]
  %v1189 = vld [vmem:[%s5 + $0x4] sm:$0xf]
  %v1190 = vld [vmem:[%s5 + $0x8] sm:$0xf]
  %v1191 = vld [vmem:[%s5 + $0xc] sm:$0xf]
  %v1192 = vld [vmem:[%s5 + $0x10] sm:$0xf]
  %v1193 = vld [vmem:[%s5 + $0x14] sm:$0xf]
  %v1194 = vld [vmem:[%s5 + $0x18] sm:$0xf]
  %v1195 = vld [vmem:[%s5 + $0x1c] sm:$0xf]
  %v1196 = vld [vmem:[%s5 + $0x20] sm:$0xf]
  %v1197 = vld [vmem:[%s5 + $0x24] sm:$0xf]
  %v1198 = vld [vmem:[%s5 + $0x28] sm:$0xf]
  %v1199 = vld [vmem:[%s5 + $0x2c] sm:$0xf]
  %v1200 = vld [vmem:[%s5 + $0x30] sm:$0xf]
  %v1201 = vld [vmem:[%s5 + $0x34] sm:$0xf]
  %v1202 = vld [vmem:[%s5 + $0x38] sm:$0xf]
  %v1203 = vld [vmem:[%s5 + $0x3c] sm:$0xf]
  %v1204 = vld [vmem:[%s6] sm:$0x1]
  %v1206 = vlaneseq
  %v1207 = vshrl.u32 %v1206, 7
  %v1208 = vsub.s32 0, %v1207
  %v1209 = vrot.slane %v1204, %v1208
  %v1227 = vunpack.c.l.b16 %v1188
  %v1228 = vunpack.c.l.b16 %v1189
  %v1229 = vunpack.c.l.b16 %v1190
  %v1230 = vunpack.c.l.b16 %v1191
  %v1231 = vunpack.c.l.b16 %v1192
  %v1232 = vunpack.c.l.b16 %v1193
  %v1233 = vunpack.c.l.b16 %v1194
  %v1234 = vunpack.c.l.b16 %v1195
  %v1235 = vunpack.c.l.b16 %v1196
  %v1236 = vunpack.c.l.b16 %v1197
  %v1237 = vunpack.c.l.b16 %v1198
  %v1238 = vunpack.c.l.b16 %v1199
  %v1239 = vunpack.c.l.b16 %v1200
  %v1240 = vunpack.c.l.b16 %v1201
  %v1241 = vunpack.c.l.b16 %v1202
  %v1242 = vunpack.c.l.b16 %v1203
  %v1243 = vpack.c.b16 %v1228, %v1227
  %v1244 = vpack.c.b16 %v1230, %v1229
  %v1245 = vpack.c.b16 %v1232, %v1231
  %v1246 = vpack.c.b16 %v1234, %v1233
  %v1247 = vpack.c.b16 %v1236, %v1235
  %v1248 = vpack.c.b16 %v1238, %v1237
  %v1249 = vpack.c.b16 %v1240, %v1239
  %v1250 = vpack.c.b16 %v1242, %v1241
  %1259 = vmatprep.subr.bf16.mxu0 0
  %1260 = vmatpush1.bf16.msra.mxu0 %v1243
  %1261 = vmatprep.subr.bf16.mxu0 0
  %1262 = vmatpush1.bf16.msra.mxu0 %v1244
  %1263 = vmatprep.subr.bf16.mxu0 0
  %1264 = vmatpush1.bf16.msra.mxu0 %v1245
  %1265 = vmatprep.subr.bf16.mxu0 0
  %1266 = vmatpush1.bf16.msra.mxu0 %v1246
  %1267 = vmatprep.subr.bf16.mxu0 0
  %1268 = vmatpush1.bf16.msra.mxu0 %v1247
  %1269 = vmatprep.subr.bf16.mxu0 0
  %1270 = vmatpush1.bf16.msra.mxu0 %v1248
  %1271 = vmatprep.subr.bf16.mxu0 0
  %1272 = vmatpush1.bf16.msra.mxu0 %v1249
  %1273 = vmatprep.subr.bf16.mxu0 0
  %1274 = vmatpush1.bf16.msra.mxu0 %v1250
  %1275 = vmatprep.subr.bf16.mxu0 0
  %1276 = vmatpush1.bf16.msra.mxu0 0
  %1277 = vmatprep.subr.bf16.mxu0 0
  %1278 = vmatpush1.bf16.msra.mxu0 0
  %1279 = vmatprep.subr.bf16.mxu0 0
  %1280 = vmatpush1.bf16.msra.mxu0 0
  %1281 = vmatprep.subr.bf16.mxu0 0
  %1282 = vmatpush1.bf16.msra.mxu0 0
  %1283 = vmatprep.subr.bf16.mxu0 0
  %1284 = vmatpush1.bf16.msra.mxu0 0
  %1285 = vmatprep.subr.bf16.mxu0 0
  %1286 = vmatpush1.bf16.msra.mxu0 0
  %1287 = vmatprep.subr.bf16.mxu0 0
  %1288 = vmatpush1.bf16.msra.mxu0 0
  %1289 = vmatprep.subr.bf16.mxu0 0
  %1290 = vmatpush1.bf16.msra.mxu0 0
  %1291 = vmatprep.mubr.bf16.mxu0 0
  %1292 = vmatmul.mubr.bf16.gmra.mrb[0].mxu0 %v1187
  %v1293 = vpop.f32.mrb[0].mxu0
  %v1294 = vadd.f32 %v1209, %v1293
  %v1295 = vpop.f32.mrb[0].mxu0
  %v1296 = vpop.f32.mrb[0].mxu0
  %v1297 = vadd.f32 %v1209, %v1296
  %v1298 = vpop.f32.mrb[0].mxu0
  %1299 = vdwg.mxu0
  %v1300 = vlaneseq
  %v1301 = vand.u32 %v1300, 127
  %vm1302 = vcmp.lt.s32.totalorder %v1301, 10
  %v1303 = vsel %vm1302, %v1294, -1e+30
  %v1304 = vsel %vm1302, %v1297, -1e+30
  %1305 = vmax.xlane.f32.xlu0 %v1303
  %v1306 = vpop.xlane.xlu0 %1305
  %1307 = vmax.xlane.f32.xlu0 %v1304
  %v1308 = vpop.xlane.xlu0 %1307
  %v1309 = vsub.f32 %v1294, %v1306
  %v1310 = vsub.f32 %v1297, %v1308
  %v1311 = vmul.f32 %v1309, 1.442695
  %v1312 = vpow.pop %v1311
  %v1313 = vmul.f32 %v1310, 1.442695
  %v1314 = vpow.pop %v1313
  %v1315 = vsel %vm1302, %v1312, 0.0
  %v1316 = vsel %vm1302, %v1314, 0.0
  %1317 = vadd.xlane.f32.xlu0 %v1315
  %v1318 = vpop.xlane.xlu0 %1317
  %1319 = vadd.xlane.f32.xlu0 %v1316
  %v1320 = vpop.xlane.xlu0 %1319
  %v1321 = vrcp.pop %v1318
  %v1322 = vmul.f32 %v1315, %v1321
  %v1323 = vrcp.pop %v1320
  %v1324 = vmul.f32 %v1316, %v1323
  %v1325 = vpack.c.bf16 %v1324, %v1322
  %v1327 = vunpack.c.l.b16 %v1325
  %v1328 = vunpack.c.h.b16 %v1325
  %v1329 = vpack.c.b16 %v1327, %v1327
  %v1330 = vpack.c.b16 %v1328, %v1328
  %1333 = vst [vmem:[%s7] sm:$0xf] %v1329
  %1334 = vst [vmem:[%s7 + $0x4] sm:$0xf] %v1330
  // Predicated region
  $region30: #{feed_forward_classifier.1} parent=0 // pred_check
    _
  $region31: #{feed_forward_classifier.1} parent=0 // pred_check_branch
    %1336 = sbr.rel (0) target = $region33
  $region32: #{feed_forward_classifier.1} parent=0 // pred_region
    _
  $region33: #{feed_forward_classifier.1} parent=0 // pred_fallthru
    _
  // Predicated region
  $region34: #{feed_forward_classifier.1} parent=0 // pred_check
    _
  $region35: #{feed_forward_classifier.1} parent=0 // pred_check_branch
    %1338 = sbr.rel (0) target = $region37
  $region36: #{feed_forward_classifier.1} parent=0 // pred_region
    _
  $region37: #{feed_forward_classifier.1} parent=0 // pred_fallthru
    _

</llo_original>
